<compile_context>
chip_gen: v5e
topology: v5e:2x2
jax: 0.10.0
libtpu: 0.0.40
codegen_flags: <defaults>
</compile_context>

<pallas_src>
import functools

import jax
import jax.numpy as jnp
from jax import lax
from jax.experimental import pallas as pl
from jax.experimental.pallas import tpu as pltpu


def a2c_fused_kernel(obs_ref, w1_ref, b1_ref, w2_ref, b2_ref, out_ref, *, n_act):
    """One batch tile of the fused actor-critic forward.

    obs_ref : [TB, d_in]      f32
    w1_ref  : [d_in, 2H]      f32   (critic hidden | actor hidden)
    b1_ref  : [1, 2H]         f32
    w2_ref  : [2H, P]         f32   col 0 = critic value head, cols 1..n_act = actor logits,
                                    cols > n_act are zero padding (P multiple of 128)
    b2_ref  : [1, P]          f32
    out_ref : [TB, P]         f32   col 0 = value, cols 1..n_act = softmax policy
    """
    x = obs_ref[...]

    # Layer 1 (both networks at once) + ReLU.
    h = jnp.dot(x, w1_ref[...], preferred_element_type=jnp.float32) + b1_ref[...]
    h = jnp.maximum(h, 0.0)

    # Layer 2 (value head + policy logits at once).
    pre = jnp.dot(h, w2_ref[...], preferred_element_type=jnp.float32) + b2_ref[...]

    # Softmax over the logit columns only (cols 1..n_act); value col and zero
    # padding columns are masked out with -inf so they contribute exp(...) = 0.
    col = lax.broadcasted_iota(jnp.int32, pre.shape, 1)
    is_logit = (col >= 1) & (col <= n_act)
    masked = jnp.where(is_logit, pre, -jnp.inf)
    m = jnp.max(masked, axis=-1, keepdims=True)
    e = jnp.exp(masked - m)
    denom = jnp.sum(e, axis=-1, keepdims=True)
    probs = e * pl.reciprocal(denom, approx=False)  # exact: keeps 1e-5 tolerance

    # Single dense store: value in col 0, policy in cols 1..n_act, zeros elsewhere.
    out_ref[...] = jnp.where(col == 0, pre, probs)


def a2c_forward(obs, actor_params, critic_params, *, tile_b=128):
    """Fused A2C forward.

    obs: [d_in] (single observation, torch-module semantics) or [B, d_in].
    Returns:
      single obs : (value [1],     policy [1, n_act])
      batched    : (value [B, 1],  policy [B, n_act])
    """
    aw1, ab1, aw2, ab2 = actor_params
    cw1, cb1, cw2, cb2 = critic_params

    single = (obs.ndim == 1)
    obs2d = obs[None, :] if single else obs
    obs2d = obs2d.astype(jnp.float32)

    batch, d_in = obs2d.shape
    hidden = aw1.shape[1]
    n_act = aw2.shape[1]
    two_h = 2 * hidden

    # ---- Pack / fuse parameters (critic first, actor second) ----
    w1 = jnp.concatenate([cw1, aw1], axis=1)                     # [d_in, 2H]
    b1 = jnp.concatenate([cb1, ab1], axis=1)                     # [1, 2H]

    n_out = 1 + n_act
    pad_out = max(128, pl.cdiv(n_out, 128) * 128)                # lane-dense output width
    w2 = jnp.zeros((two_h, pad_out), jnp.float32)
    w2 = w2.at[:hidden, 0:1].set(cw2)                            # value head uses critic hidden
    w2 = w2.at[hidden:, 1:1 + n_act].set(aw2)                    # logits use actor hidden
    b2 = jnp.zeros((1, pad_out), jnp.float32)
    b2 = b2.at[:, 0:1].set(cb2)
    b2 = b2.at[:, 1:1 + n_act].set(ab2)

    # ---- Pad batch to a multiple of the tile and grid over it ----
    batch_p = pl.cdiv(batch, tile_b) * tile_b
    obs_p = jnp.zeros((batch_p, d_in), jnp.float32).at[:batch, :].set(obs2d)
    grid = (batch_p // tile_b,)

    out = pl.pallas_call(
        functools.partial(a2c_fused_kernel, n_act=n_act),
        out_shape=jax.ShapeDtypeStruct((batch_p, pad_out), jnp.float32),
        grid=grid,
        in_specs=[
            pl.BlockSpec((tile_b, d_in), lambda b: (b, 0)),      # obs: tiled over batch
            pl.BlockSpec((d_in, two_h), lambda b: (0, 0)),       # weights: constant block
            pl.BlockSpec((1, two_h), lambda b: (0, 0)),          #   -> VMEM-resident across grid
            pl.BlockSpec((two_h, pad_out), lambda b: (0, 0)),
            pl.BlockSpec((1, pad_out), lambda b: (0, 0)),
        ],
        out_specs=pl.BlockSpec((tile_b, pad_out), lambda b: (b, 0)),
        compiler_params=pltpu.CompilerParams(
            dimension_semantics=("parallel",)),                  # 2-TC sharding on v7x
    )(obs_p, w1, b1, w2, b2)

    out = out[:batch]
    value = out[:, 0:1]                                          # [B, 1]
    policy = out[:, 1:1 + n_act]                                 # [B, n_act]

    if single:
        # Match torch: Critic(1-D obs) -> shape [1]; Actor -> [1, n_act].
        return value.reshape(1), policy
    return value, policy


def init_linear(key, fan_in, fan_out):
    """Deterministic init mimicking torch.nn.Linear default (uniform +-1/sqrt(fan_in)).
    Weight returned already transposed to [in, out]; bias as [1, out]."""
    kw, kb = jax.random.split(key)
    bound = 1.0 / jnp.sqrt(jnp.float32(fan_in))
    w = jax.random.uniform(kw, (fan_in, fan_out), jnp.float32, -bound, bound)
    b = jax.random.uniform(kb, (1, fan_out), jnp.float32, -bound, bound)
    return w, b


if __name__ == "__main__":
    # TODO(synk): get_action (Categorical sampling), history buffers and the Adam
    # update() are host-side training logic, not part of the forward pass.
    input_size, hidden_size, output_size = 16, 32, 8

    key = jax.random.PRNGKey(0)
    k_obs, k_bobs, k_a1, k_a2, k_c1, k_c2 = jax.random.split(key, 6)

    aw1, ab1 = init_linear(k_a1, input_size, hidden_size)
    aw2, ab2 = init_linear(k_a2, hidden_size, output_size)
    cw1, cb1 = init_linear(k_c1, input_size, hidden_size)
    cw2, cb2 = init_linear(k_c2, hidden_size, 1)
    actor_p = (aw1, ab1, aw2, ab2)
    critic_p = (cw1, cb1, cw2, cb2)

    # ---- 1) Single observation (exact torch-module semantics) ----
    obs1 = jax.random.normal(k_obs, (input_size,), jnp.float32)
    value1, policy1 = a2c_forward(obs1, actor_p, critic_p)
    value1 = jax.block_until_ready(value1)
    policy1 = jax.block_until_ready(policy1)

    o = obs1.reshape(1, -1)
    ref_v1 = (jnp.maximum(o @ cw1 + cb1, 0.0) @ cw2 + cb2).reshape(1)
    ref_p1 = jax.nn.softmax(jnp.maximum(o @ aw1 + ab1, 0.0) @ aw2 + ab2, axis=1)

    assert value1.shape == (1,) and policy1.shape == (1, output_size)
    assert jnp.allclose(value1, ref_v1, atol=1e-5), (value1, ref_v1)
    assert jnp.allclose(policy1, ref_p1, atol=1e-5)
    assert jnp.allclose(jnp.sum(policy1), 1.0, atol=1e-5)

    # ---- 2) Batched observations (non-multiple of tile to exercise padding) ----
    B = 200
    obs_b = jax.random.normal(k_bobs, (B, input_size), jnp.float32)
    value_b, policy_b = a2c_forward(obs_b, actor_p, critic_p)
    value_b = jax.block_until_ready(value_b)
    policy_b = jax.block_until_ready(policy_b)

    ref_vb = jnp.maximum(obs_b @ cw1 + cb1, 0.0) @ cw2 + cb2
    ref_pb = jax.nn.softmax(jnp.maximum(obs_b @ aw1 + ab1, 0.0) @ aw2 + ab2, axis=1)

    assert value_b.shape == (B, 1) and policy_b.shape == (B, output_size)
    assert jnp.allclose(value_b, ref_vb, atol=1e-5)
    assert jnp.allclose(policy_b, ref_pb, atol=1e-5)
    assert jnp.allclose(jnp.sum(policy_b, axis=1), jnp.ones((B,)), atol=1e-5)

    print("KERNEL_OK")
</pallas_src>

<mosaic_0001>
module attributes {stable_mosaic.version = 11 : i64} {
  func.func @a2c_fused_kernel(%arg0: i32, %arg1: memref<128x16xf32, #tpu.memory_space<vmem>>, %arg2: memref<16x64xf32, #tpu.memory_space<vmem>>, %arg3: memref<1x64xf32, #tpu.memory_space<vmem>>, %arg4: memref<64x128xf32, #tpu.memory_space<vmem>>, %arg5: memref<1x128xf32, #tpu.memory_space<vmem>>, %arg6: memref<128x128xf32, #tpu.memory_space<vmem>>) attributes {dimension_semantics = [#tpu.dimension_semantics<parallel>], iteration_bounds = array<i64: 1>, scalar_prefetch = 0 : i64, scratch_operands = 0 : i64, tpu.core_type = #tpu.core_type<tc>, window_params = [{transform_indices = @transform_0, window_bounds = array<i64: 128, 16>}, {pipeline_mode = #tpu.pipeline_mode<synchronous>, transform_indices = @transform_1, window_bounds = array<i64: 16, 64>}, {pipeline_mode = #tpu.pipeline_mode<synchronous>, transform_indices = @transform_2, window_bounds = array<i64: 1, 64>}, {pipeline_mode = #tpu.pipeline_mode<synchronous>, transform_indices = @transform_3, window_bounds = array<i64: 64, 128>}, {pipeline_mode = #tpu.pipeline_mode<synchronous>, transform_indices = @transform_4, window_bounds = array<i64: 1, 128>}, {transform_indices = @transform_5, window_bounds = array<i64: 128, 128>}]} {
    %c0 = arith.constant 0 : index
    %c0_0 = arith.constant 0 : index
    %0 = vector.load %arg1[%c0, %c0_0] : memref<128x16xf32, #tpu.memory_space<vmem>>, vector<128x16xf32>
    %c0_1 = arith.constant 0 : index
    %c0_2 = arith.constant 0 : index
    %1 = vector.load %arg2[%c0_1, %c0_2] : memref<16x64xf32, #tpu.memory_space<vmem>>, vector<16x64xf32>
    %cst = arith.constant dense<0.000000e+00> : vector<128x64xf32>
    %2 = tpu.matmul %0, %1, %cst {dimension_numbers = #tpu.dot_dimension_numbers<[1], [0], [0], [1], [0, 0, 1, 1], [], []>} : vector<128x16xf32>, vector<16x64xf32>, vector<128x64xf32> -> vector<128x64xf32>
    %c0_3 = arith.constant 0 : index
    %c0_4 = arith.constant 0 : index
    %3 = vector.load %arg3[%c0_3, %c0_4] : memref<1x64xf32, #tpu.memory_space<vmem>>, vector<1x64xf32>
    %4 = vector.broadcast %3 : vector<1x64xf32> to vector<128x64xf32>
    %5 = arith.addf %2, %4 : vector<128x64xf32>
    %cst_5 = arith.constant 0.000000e+00 : f32
    %6 = vector.broadcast %cst_5 : f32 to vector<128x64xf32>
    %7 = arith.maximumf %5, %6 : vector<128x64xf32>
    %c0_6 = arith.constant 0 : index
    %c0_7 = arith.constant 0 : index
    %8 = vector.load %arg4[%c0_6, %c0_7] : memref<64x128xf32, #tpu.memory_space<vmem>>, vector<64x128xf32>
    %cst_8 = arith.constant dense<0.000000e+00> : vector<128x128xf32>
    %9 = tpu.matmul %7, %8, %cst_8 {dimension_numbers = #tpu.dot_dimension_numbers<[1], [0], [0], [1], [0, 0, 1, 1], [], []>} : vector<128x64xf32>, vector<64x128xf32>, vector<128x128xf32> -> vector<128x128xf32>
    %c0_9 = arith.constant 0 : index
    %c0_10 = arith.constant 0 : index
    %10 = vector.load %arg5[%c0_9, %c0_10] : memref<1x128xf32, #tpu.memory_space<vmem>>, vector<1x128xf32>
    %11 = vector.broadcast %10 : vector<1x128xf32> to vector<128x128xf32>
    %12 = arith.addf %9, %11 : vector<128x128xf32>
    %13 = tpu.iota {dimensions = array<i32: 1>} : vector<128x128xi32>
    %c1_i32 = arith.constant 1 : i32
    %14 = vector.broadcast %c1_i32 : i32 to vector<128x128xi32>
    %15 = arith.cmpi sge, %13, %14 : vector<128x128xi32>
    %c8_i32 = arith.constant 8 : i32
    %16 = vector.broadcast %c8_i32 : i32 to vector<128x128xi32>
    %17 = arith.cmpi sle, %13, %16 : vector<128x128xi32>
    %18 = arith.andi %15, %17 : vector<128x128xi1>
    %cst_11 = arith.constant 0xFF800000 : f32
    %19 = vector.broadcast %cst_11 : f32 to vector<128x128xf32>
    %20 = arith.select %18, %12, %19 : vector<128x128xi1>, vector<128x128xf32>
    %cst_12 = arith.constant dense<0xFF800000> : vector<128xf32>
    %21 = vector.multi_reduction <maximumf>, %20, %cst_12 [1] : vector<128x128xf32> to vector<128xf32>
    %22 = vector.shape_cast %21 : vector<128xf32> to vector<128x1xf32>
    %23 = vector.broadcast %22 : vector<128x1xf32> to vector<128x128xf32>
    %24 = arith.subf %20, %23 : vector<128x128xf32>
    %25 = math.exp %24 : vector<128x128xf32>
    %cst_13 = arith.constant dense<0.000000e+00> : vector<128xf32>
    %26 = vector.multi_reduction <add>, %25, %cst_13 [1] : vector<128x128xf32> to vector<128xf32>
    %27 = vector.shape_cast %26 : vector<128xf32> to vector<128x1xf32>
    %28 = tpu.reciprocal %27 : vector<128x1xf32> -> vector<128x1xf32>
    %29 = vector.broadcast %28 : vector<128x1xf32> to vector<128x128xf32>
    %30 = arith.mulf %25, %29 : vector<128x128xf32>
    %c0_i32 = arith.constant 0 : i32
    %31 = vector.broadcast %c0_i32 : i32 to vector<128x128xi32>
    %32 = arith.cmpi eq, %13, %31 : vector<128x128xi32>
    %33 = arith.select %32, %12, %30 : vector<128x128xi1>, vector<128x128xf32>
    %c0_14 = arith.constant 0 : index
    %c0_15 = arith.constant 0 : index
    %34 = vector.load %arg6[%c0_14, %c0_15] : memref<128x128xf32, #tpu.memory_space<vmem>>, vector<128x128xf32>
    tpu.vector_store %arg6[%c0_14, %c0_15], %33 {strides = array<i32>} : memref<128x128xf32, #tpu.memory_space<vmem>>, vector<128x128xf32>,
    return
  }
  func.func @transform_0(%arg0: i32) -> (i32, i32) {
    %c0_i32 = arith.constant 0 : i32
    %c0_i32_0 = arith.constant 0 : i32
    return %arg0, %c0_i32 : i32, i32
  }
  func.func @transform_1(%arg0: i32) -> (i32, i32) {
    %c0_i32 = arith.constant 0 : i32
    %c0_i32_0 = arith.constant 0 : i32
    %c0_i32_1 = arith.constant 0 : i32
    return %c0_i32, %c0_i32_0 : i32, i32
  }
  func.func @transform_2(%arg0: i32) -> (i32, i32) {
    %c0_i32 = arith.constant 0 : i32
    %c0_i32_0 = arith.constant 0 : i32
    %c0_i32_1 = arith.constant 0 : i32
    return %c0_i32, %c0_i32_0 : i32, i32
  }
  func.func @transform_3(%arg0: i32) -> (i32, i32) {
    %c0_i32 = arith.constant 0 : i32
    %c0_i32_0 = arith.constant 0 : i32
    %c0_i32_1 = arith.constant 0 : i32
    return %c0_i32, %c0_i32_0 : i32, i32
  }
  func.func @transform_4(%arg0: i32) -> (i32, i32) {
    %c0_i32 = arith.constant 0 : i32
    %c0_i32_0 = arith.constant 0 : i32
    %c0_i32_1 = arith.constant 0 : i32
    return %c0_i32, %c0_i32_0 : i32, i32
  }
  func.func @transform_5(%arg0: i32) -> (i32, i32) {
    %c0_i32 = arith.constant 0 : i32
    %c0_i32_0 = arith.constant 0 : i32
    return %arg0, %c0_i32 : i32, i32
  }
}

</mosaic_0001>

<llo_original>
// kernel: tpu_custom_call.1
$region0: #{tpu_custom_call.1}
  #allocation0 [shape = 'u32[]', space=smem, size = 0x4, offset = 0x4, fixed_abs, tag = 'smem constant byte address 0x4 - core index']
  #allocation1 [shape = 'u32[72,128]{1,0:T(1,128)}', space=vmem, size = 0x9000, scoped, tag = 'internal scratch']
  %s0 = inlined_call_operand.vmem [shape: f32[128,16], index: 0, kind: input, shape index: {}]
  %s1 = inlined_call_operand.vmem [shape: f32[16,64], index: 1, kind: input, shape index: {}]
  %s2 = inlined_call_operand.vmem [shape: f32[1,64], index: 2, kind: input, shape index: {}]
  %s3 = inlined_call_operand.vmem [shape: f32[64,128], index: 3, kind: input, shape index: {}]
  %s4 = inlined_call_operand.vmem [shape: f32[1,128], index: 4, kind: input, shape index: {}]
  %s5 = inlined_call_operand.hbm [shape: f32[128,128], index: 5, kind: output, shape index: {}]
  %s6 = sld [smem:[#allocation0]]
  $region30: #{tpu_custom_call.1} parent=0
    _
  %s8 = ssub.s32 1, %s6
  %s9 = scalar_select 0, %s8, %s6
  $region1: #{tpu_custom_call.1} parent=0
    #allocation2 [shape = 'u8[65536]{0}', space=vmem, size = 0x10000, scoped, tag = 'output window, operand 0, single buffered']
    #allocation3 [shape = 's32[1]{0}', space=sflag, size = 0x4, scoped, tag = 'scoped memory for tpu_custom_call.1']
    %10 = vsyncpa [#allocation3], 0
    // Predicated region
    $region2: #{tpu_custom_call.1} parent=1 // pred_check
      _
    $region3: #{tpu_custom_call.1} parent=1 // pred_check_branch
      %12 = sbr.rel (0) target = $region5
    $region4: #{tpu_custom_call.1} parent=1 // pred_region
      _
    $region5: #{tpu_custom_call.1} parent=1 // pred_fallthru
      _
    // Predicated region
    $region6: #{tpu_custom_call.1} parent=1 // pred_check
      _
    $region7: #{tpu_custom_call.1} parent=1 // pred_check_branch
      %14 = sbr.rel (0) target = $region9
    $region8: #{tpu_custom_call.1} parent=1 // pred_region
      _
    $region9: #{tpu_custom_call.1} parent=1 // pred_fallthru
      _
    // Predicated region
    $region10: #{tpu_custom_call.1} parent=1 // pred_check
      _
    $region11: #{tpu_custom_call.1} parent=1 // pred_check_branch
      %16 = sbr.rel (0) target = $region13
    $region12: #{tpu_custom_call.1} parent=1 // pred_region
      _
    $region13: #{tpu_custom_call.1} parent=1 // pred_fallthru
      _
    // Predicated region
    $region14: #{tpu_custom_call.1} parent=1 // pred_check
      _
    $region15: #{tpu_custom_call.1} parent=1 // pred_check_branch
      %18 = sbr.rel (0) target = $region17
    $region16: #{tpu_custom_call.1} parent=1 // pred_region
      _
    $region17: #{tpu_custom_call.1} parent=1 // pred_fallthru
      _
    // Predicated region
    $region18: #{tpu_custom_call.1} parent=1 // pred_check
      _
    $region19: #{tpu_custom_call.1} parent=1 // pred_check_branch
      %20 = sbr.rel (0) target = $region21
    $region20: #{tpu_custom_call.1} parent=1 // pred_region
      _
    $region21: #{tpu_custom_call.1} parent=1 // pred_fallthru
      _
    %v21 = vld [vmem:[%s0] sm:$0xff]
    %v22 = vld [vmem:[%s0 + $0x8] sm:$0xff]
    %v23 = vld [vmem:[%s0 + $0x10] sm:$0xff]
    %v24 = vld [vmem:[%s0 + $0x18] sm:$0xff]
    %v25 = vld [vmem:[%s0 + $0x20] sm:$0xff]
    %v26 = vld [vmem:[%s0 + $0x28] sm:$0xff]
    %v27 = vld [vmem:[%s0 + $0x30] sm:$0xff]
    %v28 = vld [vmem:[%s0 + $0x38] sm:$0xff]
    %v29 = vld [vmem:[%s0 + $0x40] sm:$0xff]
    %v30 = vld [vmem:[%s0 + $0x48] sm:$0xff]
    %v31 = vld [vmem:[%s0 + $0x50] sm:$0xff]
    %v32 = vld [vmem:[%s0 + $0x58] sm:$0xff]
    %v33 = vld [vmem:[%s0 + $0x60] sm:$0xff]
    %v34 = vld [vmem:[%s0 + $0x68] sm:$0xff]
    %v35 = vld [vmem:[%s0 + $0x70] sm:$0xff]
    %v36 = vld [vmem:[%s0 + $0x78] sm:$0xff]
    %v37 = vld [vmem:[%s1] sm:$0xff]
    %v38 = vld [vmem:[%s1 + $0x8] sm:$0xff]
    %v39 = vld [vmem:[%s2] sm:$0x1]
    %v41 = vperm.slane %v39, 0
    %vm43 = vcmask 130048
    %v45 = vsel %vm43, %v21, 0
    %v48 = vsel %vm43, %v22, 0
    %v51 = vsel %vm43, %v23, 0
    %v54 = vsel %vm43, %v24, 0
    %v57 = vsel %vm43, %v25, 0
    %v60 = vsel %vm43, %v26, 0
    %v63 = vsel %vm43, %v27, 0
    %v66 = vsel %vm43, %v28, 0
    %v69 = vsel %vm43, %v29, 0
    %v72 = vsel %vm43, %v30, 0
    %v75 = vsel %vm43, %v31, 0
    %v78 = vsel %vm43, %v32, 0
    %v81 = vsel %vm43, %v33, 0
    %v84 = vsel %vm43, %v34, 0
    %v87 = vsel %vm43, %v35, 0
    %v90 = vsel %vm43, %v36, 0
    %92 = vmatpush.msra.mxu0 0.0
    %93 = vmatpush.msra.mxu0 0.0
    %94 = vmatpush.msra.mxu0 0.0
    %95 = vmatpush.msra.mxu0 0.0
    %96 = vmatpush.msra.mxu0 0.0
    %97 = vmatpush.msra.mxu0 0.0
    %98 = vmatpush.msra.mxu0 0.0
    %99 = vmatpush.msra.mxu0 0.0
    %100 = vmatpush.msra.mxu0 0.0
    %101 = vmatpush.msra.mxu0 0.0
    %102 = vmatpush.msra.mxu0 0.0
    %103 = vmatpush.msra.mxu0 0.0
    %104 = vmatpush.msra.mxu0 0.0
    %105 = vmatpush.msra.mxu0 0.0
    %106 = vmatpush.msra.mxu0 %v38
    %107 = vmatpush.msra.mxu0 %v37
    %108 = vmatmul.f32.gmra.mxu0 %v45
    %v109 = vpop.f32.mrf.mxu0
    %v110 = vadd.f32 %v41, %v109
    %111 = vmatmul.f32.gmra.mxu0 %v48
    %v112 = vpop.f32.mrf.mxu0
    %v113 = vadd.f32 %v41, %v112
    %114 = vmatmul.f32.gmra.mxu0 %v51
    %v115 = vpop.f32.mrf.mxu0
    %v116 = vadd.f32 %v41, %v115
    %117 = vmatmul.f32.gmra.mxu0 %v54
    %v118 = vpop.f32.mrf.mxu0
    %v119 = vadd.f32 %v41, %v118
    %120 = vmatmul.f32.gmra.mxu0 %v57
    %v121 = vpop.f32.mrf.mxu0
    %v122 = vadd.f32 %v41, %v121
    %123 = vmatmul.f32.gmra.mxu0 %v60
    %v124 = vpop.f32.mrf.mxu0
    %v125 = vadd.f32 %v41, %v124
    %126 = vmatmul.f32.gmra.mxu0 %v63
    %v127 = vpop.f32.mrf.mxu0
    %v128 = vadd.f32 %v41, %v127
    %129 = vmatmul.f32.gmra.mxu0 %v66
    %v130 = vpop.f32.mrf.mxu0
    %v131 = vadd.f32 %v41, %v130
    %132 = vmatmul.f32.gmra.mxu0 %v69
    %v133 = vpop.f32.mrf.mxu0
    %v134 = vadd.f32 %v41, %v133
    %135 = vmatmul.f32.gmra.mxu0 %v72
    %v136 = vpop.f32.mrf.mxu0
    %v137 = vadd.f32 %v41, %v136
    %138 = vmatmul.f32.gmra.mxu0 %v75
    %v139 = vpop.f32.mrf.mxu0
    %v140 = vadd.f32 %v41, %v139
    %141 = vmatmul.f32.gmra.mxu0 %v78
    %v142 = vpop.f32.mrf.mxu0
    %v143 = vadd.f32 %v41, %v142
    %144 = vmatmul.f32.gmra.mxu0 %v81
    %v145 = vpop.f32.mrf.mxu0
    %v146 = vadd.f32 %v41, %v145
    %147 = vmatmul.f32.gmra.mxu0 %v84
    %v148 = vpop.f32.mrf.mxu0
    %v149 = vadd.f32 %v41, %v148
    %150 = vmatmul.f32.gmra.mxu0 %v87
    %v151 = vpop.f32.mrf.mxu0
    %v152 = vadd.f32 %v41, %v151
    %153 = vmatmul.f32.gmra.mxu0 %v90
    %v154 = vpop.f32.mrf.mxu0
    %v155 = vadd.f32 %v41, %v154
    %156 = vdwg.mxu0
    %v157 = vmax.f32 %v110, 0.0
    %v158 = vmax.f32 %v113, 0.0
    %v159 = vmax.f32 %v116, 0.0
    %v160 = vmax.f32 %v119, 0.0
    %v161 = vmax.f32 %v122, 0.0
    %v162 = vmax.f32 %v125, 0.0
    %v163 = vmax.f32 %v128, 0.0
    %v164 = vmax.f32 %v131, 0.0
    %v165 = vmax.f32 %v134, 0.0
    %v166 = vmax.f32 %v137, 0.0
    %v167 = vmax.f32 %v140, 0.0
    %v168 = vmax.f32 %v143, 0.0
    %v169 = vmax.f32 %v146, 0.0
    %v170 = vmax.f32 %v149, 0.0
    %v171 = vmax.f32 %v152, 0.0
    %v172 = vmax.f32 %v155, 0.0
    %v173 = vld [vmem:[%s3] sm:$0xff]
    %v174 = vld [vmem:[%s3 + $0x8] sm:$0xff]
    %v175 = vld [vmem:[%s3 + $0x10] sm:$0xff]
    %v176 = vld [vmem:[%s3 + $0x18] sm:$0xff]
    %v177 = vld [vmem:[%s3 + $0x20] sm:$0xff]
    %v178 = vld [vmem:[%s3 + $0x28] sm:$0xff]
    %v179 = vld [vmem:[%s3 + $0x30] sm:$0xff]
    %v180 = vld [vmem:[%s3 + $0x38] sm:$0xff]
    %v181 = vld [vmem:[%s4] sm:$0x1]
    %v183 = vperm.slane %v181, 0
    %vm185 = vcmask 523264
    %v187 = vsel %vm185, %v157, 0
    %v190 = vsel %vm185, %v158, 0
    %v193 = vsel %vm185, %v159, 0
    %v196 = vsel %vm185, %v160, 0
    %v199 = vsel %vm185, %v161, 0
    %v202 = vsel %vm185, %v162, 0
    %v205 = vsel %vm185, %v163, 0
    %v208 = vsel %vm185, %v164, 0
    %v211 = vsel %vm185, %v165, 0
    %v214 = vsel %vm185, %v166, 0
    %v217 = vsel %vm185, %v167, 0
    %v220 = vsel %vm185, %v168, 0
    %v223 = vsel %vm185, %v169, 0
    %v226 = vsel %vm185, %v170, 0
    %v229 = vsel %vm185, %v171, 0
    %v232 = vsel %vm185, %v172, 0
    %234 = vmatpush.msra.mxu0 0.0
    %235 = vmatpush.msra.mxu0 0.0
    %236 = vmatpush.msra.mxu0 0.0
    %237 = vmatpush.msra.mxu0 0.0
    %238 = vmatpush.msra.mxu0 0.0
    %239 = vmatpush.msra.mxu0 0.0
    %240 = vmatpush.msra.mxu0 0.0
    %241 = vmatpush.msra.mxu0 0.0
    %242 = vmatpush.msra.mxu0 %v180
    %243 = vmatpush.msra.mxu0 %v179
    %244 = vmatpush.msra.mxu0 %v178
    %245 = vmatpush.msra.mxu0 %v177
    %246 = vmatpush.msra.mxu0 %v176
    %247 = vmatpush.msra.mxu0 %v175
    %248 = vmatpush.msra.mxu0 %v174
    %249 = vmatpush.msra.mxu0 %v173
    %250 = vmatmul.f32.gmra.mxu0 %v187
    %v251 = vpop.f32.mrf.mxu0
    %v252 = vadd.f32 %v183, %v251
    %253 = vmatmul.f32.gmra.mxu0 %v190
    %v254 = vpop.f32.mrf.mxu0
    %v255 = vadd.f32 %v183, %v254
    %256 = vmatmul.f32.gmra.mxu0 %v193
    %v257 = vpop.f32.mrf.mxu0
    %v258 = vadd.f32 %v183, %v257
    %259 = vmatmul.f32.gmra.mxu0 %v196
    %v260 = vpop.f32.mrf.mxu0
    %v261 = vadd.f32 %v183, %v260
    %262 = vmatmul.f32.gmra.mxu0 %v199
    %v263 = vpop.f32.mrf.mxu0
    %v264 = vadd.f32 %v183, %v263
    %265 = vmatmul.f32.gmra.mxu0 %v202
    %v266 = vpop.f32.mrf.mxu0
    %v267 = vadd.f32 %v183, %v266
    %268 = vmatmul.f32.gmra.mxu0 %v205
    %v269 = vpop.f32.mrf.mxu0
    %v270 = vadd.f32 %v183, %v269
    %271 = vmatmul.f32.gmra.mxu0 %v208
    %v272 = vpop.f32.mrf.mxu0
    %v273 = vadd.f32 %v183, %v272
    %274 = vmatmul.f32.gmra.mxu0 %v211
    %v275 = vpop.f32.mrf.mxu0
    %v276 = vadd.f32 %v183, %v275
    %277 = vmatmul.f32.gmra.mxu0 %v214
    %v278 = vpop.f32.mrf.mxu0
    %v279 = vadd.f32 %v183, %v278
    %280 = vmatmul.f32.gmra.mxu0 %v217
    %v281 = vpop.f32.mrf.mxu0
    %v282 = vadd.f32 %v183, %v281
    %283 = vmatmul.f32.gmra.mxu0 %v220
    %v284 = vpop.f32.mrf.mxu0
    %v285 = vadd.f32 %v183, %v284
    %286 = vmatmul.f32.gmra.mxu0 %v223
    %v287 = vpop.f32.mrf.mxu0
    %v288 = vadd.f32 %v183, %v287
    %289 = vmatmul.f32.gmra.mxu0 %v226
    %v290 = vpop.f32.mrf.mxu0
    %v291 = vadd.f32 %v183, %v290
    %292 = vmatmul.f32.gmra.mxu0 %v229
    %v293 = vpop.f32.mrf.mxu0
    %v294 = vadd.f32 %v183, %v293
    %295 = vmatmul.f32.gmra.mxu0 %v232
    %v296 = vpop.f32.mrf.mxu0
    %v297 = vadd.f32 %v183, %v296
    %298 = vdwg.mxu0
    %v299 = vlaneseq
    %v300 = vand.u32 %v299, 127
    %vm301 = vcmp.ge.s32.totalorder %v300, 1
    %vm302 = vcmp.le.s32.totalorder %v300, 8
    %vm303 = vmand %vm301, %vm302
    %v304 = vsel %vm303, %v252, -inf
    %v305 = vsel %vm303, %v255, -inf
    %v306 = vsel %vm303, %v258, -inf
    %v307 = vsel %vm303, %v261, -inf
    %v308 = vsel %vm303, %v264, -inf
    %v309 = vsel %vm303, %v267, -inf
    %v310 = vsel %vm303, %v270, -inf
    %v311 = vsel %vm303, %v273, -inf
    %v312 = vsel %vm303, %v276, -inf
    %v313 = vsel %vm303, %v279, -inf
    %v314 = vsel %vm303, %v282, -inf
    %v315 = vsel %vm303, %v285, -inf
    %v316 = vsel %vm303, %v288, -inf
    %v317 = vsel %vm303, %v291, -inf
    %v318 = vsel %vm303, %v294, -inf
    %v319 = vsel %vm303, %v297, -inf
    %320 = vmax.xlane.f32.xlu0 %v304
    %v321 = vpop.xlane.xlu0 %320
    %322 = vmax.xlane.f32.xlu0 %v305
    %v323 = vpop.xlane.xlu0 %322
    %324 = vmax.xlane.f32.xlu0 %v306
    %v325 = vpop.xlane.xlu0 %324
    %326 = vmax.xlane.f32.xlu0 %v307
    %v327 = vpop.xlane.xlu0 %326
    %328 = vmax.xlane.f32.xlu0 %v308
    %v329 = vpop.xlane.xlu0 %328
    %330 = vmax.xlane.f32.xlu0 %v309
    %v331 = vpop.xlane.xlu0 %330
    %332 = vmax.xlane.f32.xlu0 %v310
    %v333 = vpop.xlane.xlu0 %332
    %334 = vmax.xlane.f32.xlu0 %v311
    %v335 = vpop.xlane.xlu0 %334
    %336 = vmax.xlane.f32.xlu0 %v312
    %v337 = vpop.xlane.xlu0 %336
    %338 = vmax.xlane.f32.xlu0 %v313
    %v339 = vpop.xlane.xlu0 %338
    %340 = vmax.xlane.f32.xlu0 %v314
    %v341 = vpop.xlane.xlu0 %340
    %342 = vmax.xlane.f32.xlu0 %v315
    %v343 = vpop.xlane.xlu0 %342
    %344 = vmax.xlane.f32.xlu0 %v316
    %v345 = vpop.xlane.xlu0 %344
    %346 = vmax.xlane.f32.xlu0 %v317
    %v347 = vpop.xlane.xlu0 %346
    %348 = vmax.xlane.f32.xlu0 %v318
    %v349 = vpop.xlane.xlu0 %348
    %350 = vmax.xlane.f32.xlu0 %v319
    %v351 = vpop.xlane.xlu0 %350
    %v352 = vsub.f32 %v304, %v321
    %v353 = vsub.f32 %v305, %v323
    %v354 = vsub.f32 %v306, %v325
    %v355 = vsub.f32 %v307, %v327
    %v356 = vsub.f32 %v308, %v329
    %v357 = vsub.f32 %v309, %v331
    %v358 = vsub.f32 %v310, %v333
    %v359 = vsub.f32 %v311, %v335
    %v360 = vsub.f32 %v312, %v337
    %v361 = vsub.f32 %v313, %v339
    %v362 = vsub.f32 %v314, %v341
    %v363 = vsub.f32 %v315, %v343
    %v364 = vsub.f32 %v316, %v345
    %v365 = vsub.f32 %v317, %v347
    %v366 = vsub.f32 %v318, %v349
    %v367 = vsub.f32 %v319, %v351
    %v368 = vmul.f32 %v352, 1.442695
    %v369 = vpow.pop %v368
    %v370 = vmul.f32 %v353, 1.442695
    %v371 = vpow.pop %v370
    %v372 = vmul.f32 %v354, 1.442695
    %v373 = vpow.pop %v372
    %v374 = vmul.f32 %v355, 1.442695
    %v375 = vpow.pop %v374
    %v376 = vmul.f32 %v356, 1.442695
    %v377 = vpow.pop %v376
    %v378 = vmul.f32 %v357, 1.442695
    %v379 = vpow.pop %v378
    %v380 = vmul.f32 %v358, 1.442695
    %v381 = vpow.pop %v380
    %v382 = vmul.f32 %v359, 1.442695
    %v383 = vpow.pop %v382
    %v384 = vmul.f32 %v360, 1.442695
    %v385 = vpow.pop %v384
    %v386 = vmul.f32 %v361, 1.442695
    %v387 = vpow.pop %v386
    %v388 = vmul.f32 %v362, 1.442695
    %v389 = vpow.pop %v388
    %v390 = vmul.f32 %v363, 1.442695
    %v391 = vpow.pop %v390
    %v392 = vmul.f32 %v364, 1.442695
    %v393 = vpow.pop %v392
    %v394 = vmul.f32 %v365, 1.442695
    %v395 = vpow.pop %v394
    %v396 = vmul.f32 %v366, 1.442695
    %v397 = vpow.pop %v396
    %v398 = vmul.f32 %v367, 1.442695
    %v399 = vpow.pop %v398
    %400 = vadd.xlane.f32.xlu0 %v369
    %v401 = vpop.xlane.xlu0 %400
    %402 = vadd.xlane.f32.xlu0 %v371
    %v403 = vpop.xlane.xlu0 %402
    %404 = vadd.xlane.f32.xlu0 %v373
    %v405 = vpop.xlane.xlu0 %404
    %406 = vadd.xlane.f32.xlu0 %v375
    %v407 = vpop.xlane.xlu0 %406
    %408 = vadd.xlane.f32.xlu0 %v377
    %v409 = vpop.xlane.xlu0 %408
    %410 = vadd.xlane.f32.xlu0 %v379
    %v411 = vpop.xlane.xlu0 %410
    %412 = vadd.xlane.f32.xlu0 %v381
    %v413 = vpop.xlane.xlu0 %412
    %414 = vadd.xlane.f32.xlu0 %v383
    %v415 = vpop.xlane.xlu0 %414
    %416 = vadd.xlane.f32.xlu0 %v385
    %v417 = vpop.xlane.xlu0 %416
    %418 = vadd.xlane.f32.xlu0 %v387
    %v419 = vpop.xlane.xlu0 %418
    %420 = vadd.xlane.f32.xlu0 %v389
    %v421 = vpop.xlane.xlu0 %420
    %422 = vadd.xlane.f32.xlu0 %v391
    %v423 = vpop.xlane.xlu0 %422
    %424 = vadd.xlane.f32.xlu0 %v393
    %v425 = vpop.xlane.xlu0 %424
    %426 = vadd.xlane.f32.xlu0 %v395
    %v427 = vpop.xlane.xlu0 %426
    %428 = vadd.xlane.f32.xlu0 %v397
    %v429 = vpop.xlane.xlu0 %428
    %430 = vadd.xlane.f32.xlu0 %v399
    %v431 = vpop.xlane.xlu0 %430
    %v432 = vrcp.pop %v401
    %v433 = vmul.f32 %v401, %v432
    %v434 = vsub.f32 1.0, %v433
    %v435 = vmul.f32 %v432, %v434
    %v436 = vadd.f32 %v432, %v435
    %vm437 = vweird.f32 %v401
    %vm438 = vweird.f32 %v432
    %vm439 = vmor %vm437, %vm438
    %v440 = vsel %vm439, %v432, %v436
    %v441 = vand.u32 2147483647, %v401
    %vm442 = vcmp.eq.f32.partialorder %v441, 8.507059e+37
    %v443 = vand.u32 %v401, 2147483648
    %v444 = vor.u32 1.1754944e-38, %v443
    %v445 = vsel %vm442, %v444, %v440
    %v446 = vrcp.pop %v403
    %v447 = vmul.f32 %v403, %v446
    %v448 = vsub.f32 1.0, %v447
    %v449 = vmul.f32 %v446, %v448
    %v450 = vadd.f32 %v446, %v449
    %vm451 = vweird.f32 %v403
    %vm452 = vweird.f32 %v446
    %vm453 = vmor %vm451, %vm452
    %v454 = vsel %vm453, %v446, %v450
    %v455 = vand.u32 2147483647, %v403
    %vm456 = vcmp.eq.f32.partialorder %v455, 8.507059e+37
    %v457 = vand.u32 %v403, 2147483648
    %v458 = vor.u32 1.1754944e-38, %v457
    %v459 = vsel %vm456, %v458, %v454
    %v460 = vrcp.pop %v405
    %v461 = vmul.f32 %v405, %v460
    %v462 = vsub.f32 1.0, %v461
    %v463 = vmul.f32 %v460, %v462
    %v464 = vadd.f32 %v460, %v463
    %vm465 = vweird.f32 %v405
    %vm466 = vweird.f32 %v460
    %vm467 = vmor %vm465, %vm466
    %v468 = vsel %vm467, %v460, %v464
    %v469 = vand.u32 2147483647, %v405
    %vm470 = vcmp.eq.f32.partialorder %v469, 8.507059e+37
    %v471 = vand.u32 %v405, 2147483648
    %v472 = vor.u32 1.1754944e-38, %v471
    %v473 = vsel %vm470, %v472, %v468
    %v474 = vrcp.pop %v407
    %v475 = vmul.f32 %v407, %v474
    %v476 = vsub.f32 1.0, %v475
    %v477 = vmul.f32 %v474, %v476
    %v478 = vadd.f32 %v474, %v477
    %vm479 = vweird.f32 %v407
    %vm480 = vweird.f32 %v474
    %vm481 = vmor %vm479, %vm480
    %v482 = vsel %vm481, %v474, %v478
    %v483 = vand.u32 2147483647, %v407
    %vm484 = vcmp.eq.f32.partialorder %v483, 8.507059e+37
    %v485 = vand.u32 %v407, 2147483648
    %v486 = vor.u32 1.1754944e-38, %v485
    %v487 = vsel %vm484, %v486, %v482
    %v488 = vrcp.pop %v409
    %v489 = vmul.f32 %v409, %v488
    %v490 = vsub.f32 1.0, %v489
    %v491 = vmul.f32 %v488, %v490
    %v492 = vadd.f32 %v488, %v491
    %vm493 = vweird.f32 %v409
    %vm494 = vweird.f32 %v488
    %vm495 = vmor %vm493, %vm494
    %v496 = vsel %vm495, %v488, %v492
    %v497 = vand.u32 2147483647, %v409
    %vm498 = vcmp.eq.f32.partialorder %v497, 8.507059e+37
    %v499 = vand.u32 %v409, 2147483648
    %v500 = vor.u32 1.1754944e-38, %v499
    %v501 = vsel %vm498, %v500, %v496
    %v502 = vrcp.pop %v411
    %v503 = vmul.f32 %v411, %v502
    %v504 = vsub.f32 1.0, %v503
    %v505 = vmul.f32 %v502, %v504
    %v506 = vadd.f32 %v502, %v505
    %vm507 = vweird.f32 %v411
    %vm508 = vweird.f32 %v502
    %vm509 = vmor %vm507, %vm508
    %v510 = vsel %vm509, %v502, %v506
    %v511 = vand.u32 2147483647, %v411
    %vm512 = vcmp.eq.f32.partialorder %v511, 8.507059e+37
    %v513 = vand.u32 %v411, 2147483648
    %v514 = vor.u32 1.1754944e-38, %v513
    %v515 = vsel %vm512, %v514, %v510
    %v516 = vrcp.pop %v413
    %v517 = vmul.f32 %v413, %v516
    %v518 = vsub.f32 1.0, %v517
    %v519 = vmul.f32 %v516, %v518
    %v520 = vadd.f32 %v516, %v519
    %vm521 = vweird.f32 %v413
    %vm522 = vweird.f32 %v516
    %vm523 = vmor %vm521, %vm522
    %v524 = vsel %vm523, %v516, %v520
    %v525 = vand.u32 2147483647, %v413
    %vm526 = vcmp.eq.f32.partialorder %v525, 8.507059e+37
    %v527 = vand.u32 %v413, 2147483648
    %v528 = vor.u32 1.1754944e-38, %v527
    %v529 = vsel %vm526, %v528, %v524
    %v530 = vrcp.pop %v415
    %v531 = vmul.f32 %v415, %v530
    %v532 = vsub.f32 1.0, %v531
    %v533 = vmul.f32 %v530, %v532
    %v534 = vadd.f32 %v530, %v533
    %vm535 = vweird.f32 %v415
    %vm536 = vweird.f32 %v530
    %vm537 = vmor %vm535, %vm536
    %v538 = vsel %vm537, %v530, %v534
    %v539 = vand.u32 2147483647, %v415
    %vm540 = vcmp.eq.f32.partialorder %v539, 8.507059e+37
    %v541 = vand.u32 %v415, 2147483648
    %v542 = vor.u32 1.1754944e-38, %v541
    %v543 = vsel %vm540, %v542, %v538
    %v544 = vrcp.pop %v417
    %v545 = vmul.f32 %v417, %v544
    %v546 = vsub.f32 1.0, %v545
    %v547 = vmul.f32 %v544, %v546
    %v548 = vadd.f32 %v544, %v547
    %vm549 = vweird.f32 %v417
    %vm550 = vweird.f32 %v544
    %vm551 = vmor %vm549, %vm550
    %v552 = vsel %vm551, %v544, %v548
    %v553 = vand.u32 2147483647, %v417
    %vm554 = vcmp.eq.f32.partialorder %v553, 8.507059e+37
    %v555 = vand.u32 %v417, 2147483648
    %v556 = vor.u32 1.1754944e-38, %v555
    %v557 = vsel %vm554, %v556, %v552
    %v558 = vrcp.pop %v419
    %v559 = vmul.f32 %v419, %v558
    %v560 = vsub.f32 1.0, %v559
    %v561 = vmul.f32 %v558, %v560
    %v562 = vadd.f32 %v558, %v561
    %vm563 = vweird.f32 %v419
    %vm564 = vweird.f32 %v558
    %vm565 = vmor %vm563, %vm564
    %v566 = vsel %vm565, %v558, %v562
    %v567 = vand.u32 2147483647, %v419
    %vm568 = vcmp.eq.f32.partialorder %v567, 8.507059e+37
    %v569 = vand.u32 %v419, 2147483648
    %v570 = vor.u32 1.1754944e-38, %v569
    %v571 = vsel %vm568, %v570, %v566
    %v572 = vrcp.pop %v421
    %v573 = vmul.f32 %v421, %v572
    %v574 = vsub.f32 1.0, %v573
    %v575 = vmul.f32 %v572, %v574
    %v576 = vadd.f32 %v572, %v575
    %vm577 = vweird.f32 %v421
    %vm578 = vweird.f32 %v572
    %vm579 = vmor %vm577, %vm578
    %v580 = vsel %vm579, %v572, %v576
    %v581 = vand.u32 2147483647, %v421
    %vm582 = vcmp.eq.f32.partialorder %v581, 8.507059e+37
    %v583 = vand.u32 %v421, 2147483648
    %v584 = vor.u32 1.1754944e-38, %v583
    %v585 = vsel %vm582, %v584, %v580
    %v586 = vrcp.pop %v423
    %v587 = vmul.f32 %v423, %v586
    %v588 = vsub.f32 1.0, %v587
    %v589 = vmul.f32 %v586, %v588
    %v590 = vadd.f32 %v586, %v589
    %vm591 = vweird.f32 %v423
    %vm592 = vweird.f32 %v586
    %vm593 = vmor %vm591, %vm592
    %v594 = vsel %vm593, %v586, %v590
    %v595 = vand.u32 2147483647, %v423
    %vm596 = vcmp.eq.f32.partialorder %v595, 8.507059e+37
    %v597 = vand.u32 %v423, 2147483648
    %v598 = vor.u32 1.1754944e-38, %v597
    %v599 = vsel %vm596, %v598, %v594
    %v600 = vrcp.pop %v425
    %v601 = vmul.f32 %v425, %v600
    %v602 = vsub.f32 1.0, %v601
    %v603 = vmul.f32 %v600, %v602
    %v604 = vadd.f32 %v600, %v603
    %vm605 = vweird.f32 %v425
    %vm606 = vweird.f32 %v600
    %vm607 = vmor %vm605, %vm606
    %v608 = vsel %vm607, %v600, %v604
    %v609 = vand.u32 2147483647, %v425
    %vm610 = vcmp.eq.f32.partialorder %v609, 8.507059e+37
    %v611 = vand.u32 %v425, 2147483648
    %v612 = vor.u32 1.1754944e-38, %v611
    %v613 = vsel %vm610, %v612, %v608
    %v614 = vrcp.pop %v427
    %v615 = vmul.f32 %v427, %v614
    %v616 = vsub.f32 1.0, %v615
    %v617 = vmul.f32 %v614, %v616
    %v618 = vadd.f32 %v614, %v617
    %vm619 = vweird.f32 %v427
    %vm620 = vweird.f32 %v614
    %vm621 = vmor %vm619, %vm620
    %v622 = vsel %vm621, %v614, %v618
    %v623 = vand.u32 2147483647, %v427
    %vm624 = vcmp.eq.f32.partialorder %v623, 8.507059e+37
    %v625 = vand.u32 %v427, 2147483648
    %v626 = vor.u32 1.1754944e-38, %v625
    %v627 = vsel %vm624, %v626, %v622
    %v628 = vrcp.pop %v429
    %v629 = vmul.f32 %v429, %v628
    %v630 = vsub.f32 1.0, %v629
    %v631 = vmul.f32 %v628, %v630
    %v632 = vadd.f32 %v628, %v631
    %vm633 = vweird.f32 %v429
    %vm634 = vweird.f32 %v628
    %vm635 = vmor %vm633, %vm634
    %v636 = vsel %vm635, %v628, %v632
    %v637 = vand.u32 2147483647, %v429
    %vm638 = vcmp.eq.f32.partialorder %v637, 8.507059e+37
    %v639 = vand.u32 %v429, 2147483648
    %v640 = vor.u32 1.1754944e-38, %v639
    %v641 = vsel %vm638, %v640, %v636
    %v642 = vrcp.pop %v431
    %v643 = vmul.f32 %v431, %v642
    %v644 = vsub.f32 1.0, %v643
    %v645 = vmul.f32 %v642, %v644
    %v646 = vadd.f32 %v642, %v645
    %vm647 = vweird.f32 %v431
    %vm648 = vweird.f32 %v642
    %vm649 = vmor %vm647, %vm648
    %v650 = vsel %vm649, %v642, %v646
    %v651 = vand.u32 2147483647, %v431
    %vm652 = vcmp.eq.f32.partialorder %v651, 8.507059e+37
    %v653 = vand.u32 %v431, 2147483648
    %v654 = vor.u32 1.1754944e-38, %v653
    %v655 = vsel %vm652, %v654, %v650
    %v656 = vmul.f32 %v369, %v445
    %v657 = vmul.f32 %v371, %v459
    %v658 = vmul.f32 %v373, %v473
    %v659 = vmul.f32 %v375, %v487
    %v660 = vmul.f32 %v377, %v501
    %v661 = vmul.f32 %v379, %v515
    %v662 = vmul.f32 %v381, %v529
    %v663 = vmul.f32 %v383, %v543
    %v664 = vmul.f32 %v385, %v557
    %v665 = vmul.f32 %v387, %v571
    %v666 = vmul.f32 %v389, %v585
    %v667 = vmul.f32 %v391, %v599
    %v668 = vmul.f32 %v393, %v613
    %v669 = vmul.f32 %v395, %v627
    %v670 = vmul.f32 %v397, %v641
    %v671 = vmul.f32 %v399, %v655
    %vm672 = vcmp.eq.s32.totalorder %v300, 0
    %v673 = vsel %vm672, %v252, %v656
    %v674 = vsel %vm672, %v255, %v657
    %v675 = vsel %vm672, %v258, %v658
    %v676 = vsel %vm672, %v261, %v659
    %v677 = vsel %vm672, %v264, %v660
    %v678 = vsel %vm672, %v267, %v661
    %v679 = vsel %vm672, %v270, %v662
    %v680 = vsel %vm672, %v273, %v663
    %v681 = vsel %vm672, %v276, %v664
    %v682 = vsel %vm672, %v279, %v665
    %v683 = vsel %vm672, %v282, %v666
    %v684 = vsel %vm672, %v285, %v667
    %v685 = vsel %vm672, %v288, %v668
    %v686 = vsel %vm672, %v291, %v669
    %v687 = vsel %vm672, %v294, %v670
    %v688 = vsel %vm672, %v297, %v671
    %689 = vst [vmem:[#allocation2] sm:$0xff] %v673
    %690 = vst [vmem:[#allocation2 + $0x8] sm:$0xff] %v674
    %691 = vst [vmem:[#allocation2 + $0x10] sm:$0xff] %v675
    %692 = vst [vmem:[#allocation2 + $0x18] sm:$0xff] %v676
    %693 = vst [vmem:[#allocation2 + $0x20] sm:$0xff] %v677
    %694 = vst [vmem:[#allocation2 + $0x28] sm:$0xff] %v678
    %695 = vst [vmem:[#allocation2 + $0x30] sm:$0xff] %v679
    %696 = vst [vmem:[#allocation2 + $0x38] sm:$0xff] %v680
    %697 = vst [vmem:[#allocation2 + $0x40] sm:$0xff] %v681
    %698 = vst [vmem:[#allocation2 + $0x48] sm:$0xff] %v682
    %699 = vst [vmem:[#allocation2 + $0x50] sm:$0xff] %v683
    %700 = vst [vmem:[#allocation2 + $0x58] sm:$0xff] %v684
    %701 = vst [vmem:[#allocation2 + $0x60] sm:$0xff] %v685
    %702 = vst [vmem:[#allocation2 + $0x68] sm:$0xff] %v686
    %703 = vst [vmem:[#allocation2 + $0x70] sm:$0xff] %v687
    %704 = vst [vmem:[#allocation2 + $0x78] sm:$0xff] %v688
    // Predicated region
    $region22: #{tpu_custom_call.1} parent=1 // pred_check
      _
    $region23: #{tpu_custom_call.1} parent=1 // pred_check_branch
      %706 = sbr.rel (0) target = $region25
    $region24: #{tpu_custom_call.1} parent=1 // pred_region
      %708 = vsyncadd [#allocation3], 0
      %s709 = sshll.u32 [#allocation2], 4
      %s710 = int_to_ptr.vmem [resolvable:$true] %s709
      %s711 = sshll.u32 %s5, 4
      %s712 = int_to_ptr.hbm [resolvable:$true] %s711
      %717 = dma.vmem_to_hbm [thread:$0]  %s710, 2048, %s712, [#allocation3], 128, 128, 8
    $region25: #{tpu_custom_call.1} parent=1 // pred_fallthru
      _
    // Predicated region
    $region26: #{tpu_custom_call.1} parent=1 // pred_check
      _
    $region27: #{tpu_custom_call.1} parent=1 // pred_check_branch
      %719 = sbr.rel (0) target = $region29
    $region28: #{tpu_custom_call.1} parent=1 // pred_region
      %721 = dma.done [#allocation3], 2048
    $region29: #{tpu_custom_call.1} parent=1 // pred_fallthru
      _
    %722 = vsyncpa [#allocation3], 1

</llo_original>
